<compile_context>
chip_gen: v6e
topology: v6e:2x2x1
jax: 0.10.0
libtpu: 0.0.40
codegen_flags: <defaults>
</compile_context>

<pallas_src>
import numpy as np
import jax
import jax.numpy as jnp
from jax.experimental import pallas as pl
from jax.experimental.pallas import tpu as pltpu


def _bilinear_matrix(n_in: int, n_out: int) -> np.ndarray:
    """Exact align_corners=True 1-D bilinear interpolation matrix (n_out, n_in)."""
    A = np.zeros((n_out, n_in), dtype=np.float32)
    if n_out == 1 or n_in == 1:
        A[:, 0] = 1.0
        return A
    idx = np.arange(n_out)
    src = idx * (n_in - 1) / (n_out - 1)
    i0 = np.floor(src).astype(np.int64)
    i1 = np.minimum(i0 + 1, n_in - 1)
    w1 = (src - i0).astype(np.float32)
    w0 = (1.0 - w1).astype(np.float32)
    np.add.at(A, (idx, i0), w0)
    np.add.at(A, (idx, i1), w1)
    return A


def _kron_upsample_matrix_T(H: int, W: int, Ho: int, Wo: int) -> np.ndarray:
    """K^T with K = kron(A_h, A_w): shape (H*W, Ho*Wo); out_flat = y_flat @ K^T."""
    A_h = _bilinear_matrix(H, Ho)          # (Ho, H)
    A_w = _bilinear_matrix(W, Wo)          # (Wo, W)
    K = np.kron(A_h, A_w)                  # (Ho*Wo, H*W)
    return np.ascontiguousarray(K.T).astype(np.float32)


def _upsample_block_kernel(x_ref, w_ref, b_ref, kt_ref, o_ref):
    # x_ref : (1, Cin, H*W)     VMEM  (NCHW, spatial flattened into lanes)
    # w_ref : (Cout, Cin)       VMEM
    # b_ref : (Cout, 1)         VMEM
    # kt_ref: (H*W, PQT)        VMEM  (column tile of kron(A_h, A_w)^T)
    # o_ref : (1, Cout, PQT)    VMEM  (lane-dense output slab tile)
    x = x_ref[0]                                               # (Cin, H*W)

    # 1x1 conv == channels-first matmul; spatial stays lane-dense.
    y = jnp.dot(w_ref[...], x,
                preferred_element_type=jnp.float32) + b_ref[...]   # (Cout, H*W)

    # Bilinear upsample (align_corners=True) as one last-dim-contraction MXU matmul.
    t = jnp.dot(y, kt_ref[...],
                preferred_element_type=jnp.float32)                # (Cout, PQT)

    # Sigmoid via a single EUP tanh: sigmoid(x) = 0.5 * tanh(x/2) + 0.5.
    o_ref[0] = (0.5 * jnp.tanh(0.5 * t) + 0.5).astype(o_ref.dtype)


def upsample_block(x_nchw, conv_w, conv_b, scale: int = 2):
    """x_nchw: (N, Cin, H, W); conv_w: (Cout, Cin) [1x1 kernel]; conv_b: (Cout,)."""
    N, Cin, H, W = x_nchw.shape
    Cout = conv_w.shape[0]
    Ho, Wo = H * scale, W * scale
    HW, HoWo = H * W, Ho * Wo

    # Free (bitcast) reshape: NCHW -> (N, Cin, H*W). No transposes, no extra HBM passes.
    x_flat = x_nchw.reshape(N, Cin, HW)
    b = conv_b.reshape(Cout, 1)
    kt = jnp.asarray(_kron_upsample_matrix_T(H, W, Ho, Wo))      # (H*W, Ho*Wo)

    # Tile the flattened output-pixel axis: keeps blocks lane-dense (multiple of 128),
    # bounds VMEM, and gives a second "parallel" grid axis for v7x's two TensorCores.
    if HoWo >= 1024 and HoWo % 512 == 0:
        pq_tile = 512
    else:
        pq_tile = HoWo
    num_pq_tiles = HoWo // pq_tile

    out_flat = pl.pallas_call(
        _upsample_block_kernel,
        out_shape=jax.ShapeDtypeStruct((N, Cout, HoWo), jnp.float32),
        grid_spec=pltpu.PrefetchScalarGridSpec(
            num_scalar_prefetch=0,
            grid=(N, num_pq_tiles),
            in_specs=[
                pl.BlockSpec((1, Cin, HW), lambda n, j: (n, 0, 0)),
                pl.BlockSpec((Cout, Cin), lambda n, j: (0, 0)),
                pl.BlockSpec((Cout, 1), lambda n, j: (0, 0)),
                pl.BlockSpec((HW, pq_tile), lambda n, j: (0, j)),
            ],
            out_specs=pl.BlockSpec((1, Cout, pq_tile), lambda n, j: (n, 0, j)),
        ),
        compiler_params=pltpu.CompilerParams(
            dimension_semantics=("parallel", "parallel"),
            vmem_limit_bytes=32 * 1024 * 1024,
        ),
    )(x_flat, conv_w, b, kt)

    # Free (bitcast) reshape back to NCHW.
    return out_flat.reshape(N, Cout, Ho, Wo)


def _reference(x_nchw, conv_w, conv_b, scale=2):
    """Pure-JAX reference: conv1x1 -> align_corners bilinear upsample -> sigmoid."""
    N, Cin, H, W = x_nchw.shape
    y = jnp.einsum('nchw,oc->nohw', x_nchw, conv_w) + conv_b[None, :, None, None]
    A_h = jnp.asarray(_bilinear_matrix(H, H * scale))
    A_w = jnp.asarray(_bilinear_matrix(W, W * scale))
    up = jnp.einsum('ph,nchw,qw->ncpq', A_h, y, A_w)
    return jax.nn.sigmoid(up)


if __name__ == "__main__":
    key = jax.random.PRNGKey(0)
    k1, k2, k3 = jax.random.split(key, 3)

    N, Cin, Cout, H, W = 2, 4, 8, 16, 16
    x = jax.random.normal(k1, (N, Cin, H, W), dtype=jnp.float32)

    # Deterministic parameter init (PyTorch Conv2d(in,out,1): weight (Cout,Cin,1,1), bias (Cout,))
    fan_in = Cin  # 1x1 kernel
    bound = 1.0 / np.sqrt(fan_in)
    conv_w = jax.random.uniform(k2, (Cout, Cin), dtype=jnp.float32,
                                minval=-bound, maxval=bound)
    conv_b = jax.random.uniform(k3, (Cout,), dtype=jnp.float32,
                                minval=-bound, maxval=bound)

    out = upsample_block(x, conv_w, conv_b, scale=2)
    out = jax.block_until_ready(out)

    ref = _reference(x, conv_w, conv_b, scale=2)
    assert out.shape == (N, Cout, H * 2, W * 2), out.shape
    np.testing.assert_allclose(np.asarray(out), np.asarray(ref), rtol=1e-5, atol=1e-5)

    print("KERNEL_OK")
</pallas_src>

<mosaic_0001>
module attributes {stable_mosaic.version = 11 : i64} {
  func.func @_upsample_block_kernel(%arg0: i32, %arg1: i32, %arg2: memref<1x4x256xf32, #tpu.memory_space<vmem>>, %arg3: memref<8x4xf32, #tpu.memory_space<vmem>>, %arg4: memref<8x1xf32, #tpu.memory_space<vmem>>, %arg5: memref<256x512xf32, #tpu.memory_space<vmem>>, %arg6: memref<1x8x512xf32, #tpu.memory_space<vmem>>) attributes {dimension_semantics = [#tpu.dimension_semantics<parallel>, #tpu.dimension_semantics<parallel>], iteration_bounds = array<i64: 2, 2>, scalar_prefetch = 0 : i64, scratch_operands = 0 : i64, tpu.core_type = #tpu.core_type<tc>, window_params = [{transform_indices = @transform_0, window_bounds = array<i64: 1, 4, 256>}, {pipeline_mode = #tpu.pipeline_mode<synchronous>, transform_indices = @transform_1, window_bounds = array<i64: 8, 4>}, {pipeline_mode = #tpu.pipeline_mode<synchronous>, transform_indices = @transform_2, window_bounds = array<i64: 8, 1>}, {transform_indices = @transform_3, window_bounds = array<i64: 256, 512>}, {transform_indices = @transform_4, window_bounds = array<i64: 1, 8, 512>}]} {
    %c0 = arith.constant 0 : index
    %c0_0 = arith.constant 0 : index
    %c0_1 = arith.constant 0 : index
    %0 = vector.load %arg2[%c0, %c0_0, %c0_1] : memref<1x4x256xf32, #tpu.memory_space<vmem>>, vector<1x4x256xf32>
    %1 = vector.shape_cast %0 : vector<1x4x256xf32> to vector<4x256xf32>
    %c0_2 = arith.constant 0 : index
    %c0_3 = arith.constant 0 : index
    %2 = vector.load %arg3[%c0_2, %c0_3] : memref<8x4xf32, #tpu.memory_space<vmem>>, vector<8x4xf32>
    %cst = arith.constant dense<0.000000e+00> : vector<8x256xf32>
    %3 = tpu.matmul %2, %1, %cst {dimension_numbers = #tpu.dot_dimension_numbers<[1], [0], [0], [1], [0, 0, 1, 1], [], []>} : vector<8x4xf32>, vector<4x256xf32>, vector<8x256xf32> -> vector<8x256xf32>
    %c0_4 = arith.constant 0 : index
    %c0_5 = arith.constant 0 : index
    %4 = vector.load %arg4[%c0_4, %c0_5] : memref<8x1xf32, #tpu.memory_space<vmem>>, vector<8x1xf32>
    %5 = vector.broadcast %4 : vector<8x1xf32> to vector<8x256xf32>
    %6 = arith.addf %3, %5 : vector<8x256xf32>
    %c0_6 = arith.constant 0 : index
    %c0_7 = arith.constant 0 : index
    %7 = vector.load %arg5[%c0_6, %c0_7] : memref<256x512xf32, #tpu.memory_space<vmem>>, vector<256x512xf32>
    %cst_8 = arith.constant dense<0.000000e+00> : vector<8x512xf32>
    %8 = tpu.matmul %6, %7, %cst_8 {dimension_numbers = #tpu.dot_dimension_numbers<[1], [0], [0], [1], [0, 0, 1, 1], [], []>} : vector<8x256xf32>, vector<256x512xf32>, vector<8x512xf32> -> vector<8x512xf32>
    %cst_9 = arith.constant 5.000000e-01 : f32
    %9 = vector.broadcast %cst_9 : f32 to vector<8x512xf32>
    %10 = arith.mulf %9, %8 : vector<8x512xf32>
    %11 = math.tanh %10 : vector<8x512xf32>
    %cst_10 = arith.constant 5.000000e-01 : f32
    %12 = vector.broadcast %cst_10 : f32 to vector<8x512xf32>
    %13 = arith.mulf %12, %11 : vector<8x512xf32>
    %cst_11 = arith.constant 5.000000e-01 : f32
    %14 = vector.broadcast %cst_11 : f32 to vector<8x512xf32>
    %15 = arith.addf %13, %14 : vector<8x512xf32>
    %c0_12 = arith.constant 0 : index
    %c0_13 = arith.constant 0 : index
    %c0_14 = arith.constant 0 : index
    %16 = vector.load %arg6[%c0_12, %c0_13, %c0_14] : memref<1x8x512xf32, #tpu.memory_space<vmem>>, vector<1x8x512xf32>
    %17 = vector.shape_cast %16 : vector<1x8x512xf32> to vector<8x512xf32>
    %18 = vector.shape_cast %15 : vector<8x512xf32> to vector<1x8x512xf32>
    tpu.vector_store %arg6[%c0_12, %c0_13, %c0_14], %18 {strides = array<i32>} : memref<1x8x512xf32, #tpu.memory_space<vmem>>, vector<1x8x512xf32>,
    return
  }
  func.func @transform_0(%arg0: i32, %arg1: i32) -> (i32, i32, i32) {
    %c0_i32 = arith.constant 0 : i32
    %c0_i32_0 = arith.constant 0 : i32
    %c0_i32_1 = arith.constant 0 : i32
    return %arg0, %c0_i32, %c0_i32_0 : i32, i32, i32
  }
  func.func @transform_1(%arg0: i32, %arg1: i32) -> (i32, i32) {
    %c0_i32 = arith.constant 0 : i32
    %c0_i32_0 = arith.constant 0 : i32
    %c0_i32_1 = arith.constant 0 : i32
    return %c0_i32, %c0_i32_0 : i32, i32
  }
  func.func @transform_2(%arg0: i32, %arg1: i32) -> (i32, i32) {
    %c0_i32 = arith.constant 0 : i32
    %c0_i32_0 = arith.constant 0 : i32
    %c0_i32_1 = arith.constant 0 : i32
    return %c0_i32, %c0_i32_0 : i32, i32
  }
  func.func @transform_3(%arg0: i32, %arg1: i32) -> (i32, i32) {
    %c0_i32 = arith.constant 0 : i32
    %c0_i32_0 = arith.constant 0 : i32
    return %c0_i32, %arg1 : i32, i32
  }
  func.func @transform_4(%arg0: i32, %arg1: i32) -> (i32, i32, i32) {
    %c0_i32 = arith.constant 0 : i32
    %c0_i32_0 = arith.constant 0 : i32
    return %arg0, %c0_i32, %arg1 : i32, i32, i32
  }
}

</mosaic_0001>

<llo_original>
// kernel: tpu_custom_call.1
$region0: #{tpu_custom_call.1}
  #allocation0 [shape = 'u32[]', space=smem, size = 0x4, offset = 0x4, fixed_abs, tag = 'smem constant byte address 0x4 - core index']
  #allocation1 [shape = 'u32[144,128]{1,0:T(1,128)}', space=vmem, size = 0x12000, scoped, tag = 'internal scratch']
  %s0 = inlined_call_operand.vmem [shape: f32[2,4,256], index: 0, kind: input, shape index: {}]
  %s1 = inlined_call_operand.vmem [shape: f32[8,4], index: 1, kind: input, shape index: {}]
  %s2 = inlined_call_operand.vmem [shape: f32[8,1], index: 2, kind: input, shape index: {}]
  %s3 = inlined_call_operand.hbm [shape: f32[256,1024], index: 3, kind: input, shape index: {}]
  %s4 = inlined_call_operand.hbm [shape: f32[2,8,1024], index: 4, kind: output, shape index: {}]
  %s5 = sld [smem:[#allocation0]]
  $region53: #{tpu_custom_call.1} parent=0
    _
  %s7 = ssub.s32 1, %s5
  %s8 = scalar_select 0, %s7, %s5
  $region1: #{tpu_custom_call.1} parent=0
    #allocation2 [shape = 'u8[1048576]{0}', space=vmem, size = 0x100000, scoped, tag = 'input window, operand 3']
    #allocation3 [shape = 's32[2]{0}', space=sflag, size = 0x8, scoped, tag = 'scoped memory for tpu_custom_call.1']
    #allocation4 [shape = 's32[2]{0}', space=sflag, size = 0x8, scoped, tag = 'scoped memory for tpu_custom_call.1']
    #allocation5 [shape = 'u8[32768]{0}', space=vmem, size = 0x8000, scoped, tag = 'output window, operand 0']
    %9 = vsyncpa [#allocation3], 0
    %s10 = scalar_lea.sflag [#allocation3], 1
    %11 = vsyncpa %s10, 0
    %12 = vsyncpa [#allocation4], 0
    %s13 = scalar_lea.sflag [#allocation4], 1
    %14 = vsyncpa %s13, 0
    loop: start=0, step=1, limit=6
    $region2: #{tpu_custom_call.1} parent=1 // loop_pre_header
      _
    $region3: #{tpu_custom_call.1} parent=1 // loop_header
      %s16 = sphi 0, %s20
      %p17 = scmp.ge.s32.totalorder %s16, 6
      %s23 = sphi 0, %s35
      %s24 = sphi 0, %s31
      %s25 = sphi 0, %s23
      %s26 = sphi 0, %s24
      %s27 = sphi 0, %s25
      %s28 = sphi 0, %s26
      %s38 = sphi 0, %s40
      %s41 = sphi 0, %s38
      %s42 = sphi 0, %s41
      %s58 = sphi 0, %s42
      %s62 = sphi 0, %s62
      %s64 = sphi 0, %s62
      %s65 = sphi 0, %s64
      %s79 = sphi 0, %s65
      %s83 = sphi 0, %s83
      %s85 = sphi 0, %s83
      %s86 = sphi 0, %s85
      %s100 = sphi 0, %s86
      %s106 = sphi 0, %s108
      %s109 = sphi 0, %s106
      %s110 = sphi 0, %s109
      %s126 = sphi 0, %s110
      %s134 = sphi 0, %s136
      %s137 = sphi 0, %s134
      %s138 = sphi 0, %s137
      %s154 = sphi 0, %s138
    $region4: #{tpu_custom_call.1} parent=1 // loop_header_branch
      %19 = sbr.rel (%p17) target = $region8
    $region5: #{tpu_custom_call.1} parent=1 // loop_body
      %s21 = ssub.s32 %s16, 1
      %s22 = ssub.s32 %s16, 2
      %s29 = sadd.s32 1, %s24
      %p30 = scmp.ge.s32.totalorder %s29, 2
      %s31 = scalar_select %p30, 0, %s29
      %s32 = sadd.s32 1, %s23
      %s33 = scalar_select %p30, %s32, %s23
      %p34 = scmp.ge.s32.totalorder %s33, 2
      %s35 = scalar_select %p34, 0, %s33
      %s36 = ssub.s32 %s23, %s35
      %p37 = scmp.eq.s32.totalorder %s36, 0
      %s39 = sadd.s32 %s38, 1
      %s40 = scalar_select %p37, %s38, %s39
      %p43 = pneg %p37
      %p44 = scmp.eq.s32.totalorder %s16, 3
      %p45 = por %p43, %p44
      %p46 = scmp.ne.s32.totalorder %s38, %s41
      %p47 = scmp.eq.s32.totalorder %s16, 0
      %p48 = por %p46, %p47
      %p49 = scmp.ne.s32.totalorder %s38, %s41
      %p50 = scmp.eq.s32.totalorder %s21, 3
      %p51 = por %p49, %p50
      %p52 = scmp.ne.s32.totalorder %s41, %s42
      %p53 = scmp.eq.s32.totalorder %s21, 0
      %p54 = por %p52, %p53
      %p55 = scmp.ne.s32.totalorder %s41, %s42
      %p56 = scmp.eq.s32.totalorder %s22, 3
      %p57 = por %p55, %p56
      %p59 = scmp.ne.s32.totalorder %s42, %s58
      %p60 = scmp.eq.s32.totalorder %s22, 0
      %p61 = por %p59, %p60
      %s63 = sadd.s32 %s62, 1
      %p66 = scmp.eq.s32.totalorder %s16, 3
      %p67 = scmp.ne.s32.totalorder %s62, %s64
      %p68 = scmp.eq.s32.totalorder %s16, 0
      %p69 = por %p67, %p68
      %p70 = scmp.ne.s32.totalorder %s62, %s64
      %p71 = scmp.eq.s32.totalorder %s21, 3
      %p72 = por %p70, %p71
      %p73 = scmp.ne.s32.totalorder %s64, %s65
      %p74 = scmp.eq.s32.totalorder %s21, 0
      %p75 = por %p73, %p74
      %p76 = scmp.ne.s32.totalorder %s64, %s65
      %p77 = scmp.eq.s32.totalorder %s22, 3
      %p78 = por %p76, %p77
      %p80 = scmp.ne.s32.totalorder %s65, %s79
      %p81 = scmp.eq.s32.totalorder %s22, 0
      %p82 = por %p80, %p81
      %s84 = sadd.s32 %s83, 1
      %p87 = scmp.eq.s32.totalorder %s16, 3
      %p88 = scmp.ne.s32.totalorder %s83, %s85
      %p89 = scmp.eq.s32.totalorder %s16, 0
      %p90 = por %p88, %p89
      %p91 = scmp.ne.s32.totalorder %s83, %s85
      %p92 = scmp.eq.s32.totalorder %s21, 3
      %p93 = por %p91, %p92
      %p94 = scmp.ne.s32.totalorder %s85, %s86
      %p95 = scmp.eq.s32.totalorder %s21, 0
      %p96 = por %p94, %p95
      %p97 = scmp.ne.s32.totalorder %s85, %s86
      %p98 = scmp.eq.s32.totalorder %s22, 3
      %p99 = por %p97, %p98
      %p101 = scmp.ne.s32.totalorder %s86, %s100
      %p102 = scmp.eq.s32.totalorder %s22, 0
      %p103 = por %p101, %p102
      %s104 = ssub.s32 %s24, %s31
      %p105 = scmp.eq.s32.totalorder %s104, 0
      %s107 = sadd.s32 %s106, 1
      %s108 = scalar_select %p105, %s106, %s107
      %p111 = pneg %p105
      %p112 = scmp.eq.s32.totalorder %s16, 3
      %p113 = por %p111, %p112
      %p114 = scmp.ne.s32.totalorder %s106, %s109
      %p115 = scmp.eq.s32.totalorder %s16, 0
      %p116 = por %p114, %p115
      %p117 = scmp.ne.s32.totalorder %s106, %s109
      %p118 = scmp.eq.s32.totalorder %s21, 3
      %p119 = por %p117, %p118
      %p120 = scmp.ne.s32.totalorder %s109, %s110
      %p121 = scmp.eq.s32.totalorder %s21, 0
      %p122 = por %p120, %p121
      %p123 = scmp.ne.s32.totalorder %s109, %s110
      %p124 = scmp.eq.s32.totalorder %s22, 3
      %p125 = por %p123, %p124
      %p127 = scmp.ne.s32.totalorder %s110, %s126
      %p128 = scmp.eq.s32.totalorder %s22, 0
      %p129 = por %p127, %p128
      %s130 = ssub.s32 %s23, %s35
      %s131 = ssub.s32 %s24, %s31
      %s132 = sor.u32 %s130, %s131
      %p133 = scmp.eq.s32.totalorder %s132, 0
      %s135 = sadd.s32 %s134, 1
      %s136 = scalar_select %p133, %s134, %s135
      %p139 = pneg %p133
      %p140 = scmp.eq.s32.totalorder %s16, 3
      %p141 = por %p139, %p140
      %p142 = scmp.ne.s32.totalorder %s134, %s137
      %p143 = scmp.eq.s32.totalorder %s16, 0
      %p144 = por %p142, %p143
      %p145 = scmp.ne.s32.totalorder %s134, %s137
      %p146 = scmp.eq.s32.totalorder %s21, 3
      %p147 = por %p145, %p146
      %p148 = scmp.ne.s32.totalorder %s137, %s138
      %p149 = scmp.eq.s32.totalorder %s21, 0
      %p150 = por %p148, %p149
      %p151 = scmp.ne.s32.totalorder %s137, %s138
      %p152 = scmp.eq.s32.totalorder %s22, 3
      %p153 = por %p151, %p152
      %p155 = scmp.ne.s32.totalorder %s138, %s154
      %p156 = scmp.eq.s32.totalorder %s22, 0
      %p157 = por %p155, %p156
      %p158 = scmp.le.s32.totalorder 1, %s16
      %p159 = scmp.lt.s32.totalorder %s16, 5
      %p160 = pnand %p158, %p159
      %p161 = pneg %p160
      // Predicated region
      $region9: #{tpu_custom_call.1} parent=5 // pred_check
        _
      $region10: #{tpu_custom_call.1} parent=5 // pred_check_branch
        %163 = sbr.rel (%p160) target = $region12
      $region11: #{tpu_custom_call.1} parent=5 // pred_region
        %s164 = ssub.s32 %s16, 1
        // Predicated region
        $region13: #{tpu_custom_call.1} parent=11 // pred_check
          %p165 = pneg %p75
        $region14: #{tpu_custom_call.1} parent=11 // pred_check_branch
          %167 = sbr.rel (%p165) target = $region16
        $region15: #{tpu_custom_call.1} parent=11 // pred_region
          _
        $region16: #{tpu_custom_call.1} parent=11 // pred_fallthru
          _
        // Predicated region
        $region17: #{tpu_custom_call.1} parent=11 // pred_check
          %p168 = pneg %p96
        $region18: #{tpu_custom_call.1} parent=11 // pred_check_branch
          %170 = sbr.rel (%p168) target = $region20
        $region19: #{tpu_custom_call.1} parent=11 // pred_region
          _
        $region20: #{tpu_custom_call.1} parent=11 // pred_fallthru
          _
      $region12: #{tpu_custom_call.1} parent=5 // pred_fallthru
        _
      %p171 = scmp.lt.s32.totalorder %s16, 4
      // Predicated region
      $region21: #{tpu_custom_call.1} parent=5 // pred_check
        %p172 = pneg %p171
      $region22: #{tpu_custom_call.1} parent=5 // pred_check_branch
        %174 = sbr.rel (%p172) target = $region24
      $region23: #{tpu_custom_call.1} parent=5 // pred_region
        // Predicated region
        $region25: #{tpu_custom_call.1} parent=23 // pred_check
          %p175 = pneg %p48
        $region26: #{tpu_custom_call.1} parent=23 // pred_check_branch
          %177 = sbr.rel (%p175) target = $region28
        $region27: #{tpu_custom_call.1} parent=23 // pred_region
          %p178 = scmp.lt.s32.totalorder %s23, 1
          %s179 = scalar_select %p178, %s23, 1
          %s180 = smul.addr %s179, 2
          %s181 = smul.addr %s180, 4
          %s182 = scalar_lea.vmem %s0, %s181
        $region28: #{tpu_custom_call.1} parent=23 // pred_fallthru
          _
        // Predicated region
        $region29: #{tpu_custom_call.1} parent=23 // pred_check
          %p183 = pneg %p116
        $region30: #{tpu_custom_call.1} parent=23 // pred_check_branch
          %185 = sbr.rel (%p183) target = $region32
        $region31: #{tpu_custom_call.1} parent=23 // pred_region
          %s186 = sand.u32 %s106, 1
          %s187 = scalar_lea.sflag [#allocation3], %s186
          %s188 = sand.u32 %s106, 1
          %s189 = smul.addr %s188, 1024
          %s190 = scalar_lea.vmem [#allocation2], %s189
          %s191 = smul.u32 4, %s24
          %s193 = ssub.s32 16384, 16384
          %194 = vsyncadd %s187, %s193
          %s195 = smul.addr %s191, 128
          %s196 = scalar_lea.hbm %s3, %s195
          %s197 = sshll.u32 %s190, 4
          %s198 = int_to_ptr.vmem [resolvable:$true] %s197
          %203 = dma.hbm_to_vmem [thread:$0]  %s196, 16384, %s198, %s187, 1024, 512, 32
        $region32: #{tpu_custom_call.1} parent=23 // pred_fallthru
          _
      $region24: #{tpu_custom_call.1} parent=5 // pred_fallthru
        _
      %p204 = scmp.le.s32.totalorder 1, %s16
      %p205 = scmp.lt.s32.totalorder %s16, 5
      %p206 = pnand %p204, %p205
      %p207 = pneg %p206
      // Predicated region
      $region33: #{tpu_custom_call.1} parent=5 // pred_check
        _
      $region34: #{tpu_custom_call.1} parent=5 // pred_check_branch
        %209 = sbr.rel (%p206) target = $region36
      $region35: #{tpu_custom_call.1} parent=5 // pred_region
        %s210 = ssub.s32 %s16, 1
        %s211 = sand.u32 %s109, 1
        %s212 = scalar_lea.sflag [#allocation3], %s211
        %s213 = sand.u32 %s109, 1
        %s214 = smul.addr %s213, 1024
        %s215 = scalar_lea.vmem [#allocation2], %s214
        // Predicated region
        $region37: #{tpu_custom_call.1} parent=35 // pred_check
          %p216 = pneg %p122
        $region38: #{tpu_custom_call.1} parent=35 // pred_check_branch
          %218 = sbr.rel (%p216) target = $region40
        $region39: #{tpu_custom_call.1} parent=35 // pred_region
          %219 = dma.done %s212, 16384
        $region40: #{tpu_custom_call.1} parent=35 // pred_fallthru
          _
        %p220 = scmp.lt.s32.totalorder %s25, 1
        %s221 = scalar_select %p220, %s25, 1
        %s222 = smul.addr %s221, 2
        %s223 = smul.addr %s222, 4
        %s224 = scalar_lea.vmem %s0, %s223
        %p225 = pneg %p54
        %p226 = pneg %p51
        %p227 = pneg %p75
        %p228 = pneg %p72
        %p229 = pneg %p96
        %p230 = pneg %p93
        %s231 = sand.u32 %s109, 1
        %s232 = scalar_lea.sflag [#allocation3], %s231
        %s233 = sand.u32 %s109, 1
        %s234 = smul.addr %s233, 1024
        %s235 = scalar_lea.vmem [#allocation2], %s234
        %p236 = pneg %p122
        %p237 = pneg %p119
        %p238 = pneg %p150
        %p239 = pneg %p147
        %s240 = sand.u32 %s137, 1
        %s241 = scalar_lea.sflag [#allocation4], %s240
        %s242 = sand.u32 %s137, 1
        %s243 = smul.addr %s242, 32
        %s244 = scalar_lea.vmem [#allocation5], %s243
        %p245 = scmp.lt.s32.totalorder %s25, 1
        %s246 = scalar_select %p245, %s25, 1
        %s247 = smul.addr %s246, 2
        %s248 = smul.addr %s247, 4
        %s249 = scalar_lea.vmem %s0, %s248
        %s250 = smul.u32 4, %s26
        %s251 = smul.u32 4, %s26
        %v252 = vld [vmem:[%s249] sm:$0xff]
        %v253 = vld [vmem:[%s1] sm:$0xff]
        %v254 = vld [vmem:[%s2] sm:$0xff]
        %256 = vset.pattern.permute.xlu0 0
        %257 = vperm.xlu0 %256, %v254
        %v258 = vpop.permute.xlu0 %257
        %v261 = vcombine.high %v252, %v252
        %vm262 = vcmask 31744
        %v264 = vsel %vm262, %v253, 0
        %vm266 = vcmask 1043456
        %v267 = vsel %vm266, %v252, 0
        %v269 = vsel %vm266, %v261, 0
        %271 = vmatprep.subr.mxu0 0.0
        %272 = vmatpush1.msra.mxu0 0.0
        %273 = vmatprep.subr.mxu0 0.0
        %274 = vmatpush1.msra.mxu0 0.0
        %275 = vmatprep.subr.mxu0 0.0
        %276 = vmatpush1.msra.mxu0 0.0
        %277 = vmatprep.subr.mxu0 0.0
        %278 = vmatpush1.msra.mxu0 0.0
        %279 = vmatprep.subr.mxu0 0.0
        %280 = vmatpush1.msra.mxu0 0.0
        %281 = vmatprep.subr.mxu0 0.0
        %282 = vmatpush1.msra.mxu0 0.0
        %283 = vmatprep.subr.mxu0 0.0
        %284 = vmatpush1.msra.mxu0 0.0
        %285 = vmatprep.subr.mxu0 0.0
        %286 = vmatpush1.msra.mxu0 0.0
        %287 = vmatprep.subr.mxu0 0.0
        %288 = vmatpush1.msra.mxu0 0.0
        %289 = vmatprep.subr.mxu0 0.0
        %290 = vmatpush1.msra.mxu0 0.0
        %291 = vmatprep.subr.mxu0 0.0
        %292 = vmatpush1.msra.mxu0 0.0
        %293 = vmatprep.subr.mxu0 0.0
        %294 = vmatpush1.msra.mxu0 0.0
        %295 = vmatprep.subr.mxu0 0.0
        %296 = vmatpush1.msra.mxu0 0.0
        %297 = vmatprep.subr.mxu0 0.0
        %298 = vmatpush1.msra.mxu0 0.0
        %299 = vmatprep.subr.mxu0 0.0
        %300 = vmatpush1.msra.mxu0 0.0
        %301 = vmatprep.subr.mxu0 %v269
        %302 = vmatpush1.msra.mxu0 %v267
        %303 = vmatprep.subr.mxu0 0.0
        %304 = vmatpush2.msra.mxu0 0.0
        %305 = vmatprep.subr.mxu0 0.0
        %306 = vmatpush2.msra.mxu0 0.0
        %307 = vmatprep.subr.mxu0 0.0
        %308 = vmatpush2.msra.mxu0 0.0
        %309 = vmatprep.subr.mxu0 0.0
        %310 = vmatpush2.msra.mxu0 0.0
        %311 = vmatprep.subr.mxu0 0.0
        %312 = vmatpush2.msra.mxu0 0.0
        %313 = vmatprep.subr.mxu0 0.0
        %314 = vmatpush2.msra.mxu0 0.0
        %315 = vmatprep.subr.mxu0 0.0
        %316 = vmatpush2.msra.mxu0 0.0
        %317 = vmatprep.subr.mxu0 0.0
        %318 = vmatpush2.msra.mxu0 0.0
        %319 = vmatprep.subr.mxu0 0.0
        %320 = vmatpush2.msra.mxu0 0.0
        %321 = vmatprep.subr.mxu0 0.0
        %322 = vmatpush2.msra.mxu0 0.0
        %323 = vmatprep.subr.mxu0 0.0
        %324 = vmatpush2.msra.mxu0 0.0
        %325 = vmatprep.subr.mxu0 0.0
        %326 = vmatpush2.msra.mxu0 0.0
        %327 = vmatprep.subr.mxu0 0.0
        %328 = vmatpush2.msra.mxu0 0.0
        %329 = vmatprep.subr.mxu0 0.0
        %330 = vmatpush2.msra.mxu0 0.0
        %331 = vmatprep.subr.mxu0 0.0
        %332 = vmatpush2.msra.mxu0 0.0
        %333 = vmatprep.subr.mxu0 0.0
        %334 = vmatpush2.msra.mxu0 0.0
        %335 = vmatprep.mubr.f32.mxu0 0.0
        %336 = vmatmul.mubr.f32.gmra.mxu0 %v264
        %v337 = vpop.f32.mrf.mxu0
        %v338 = vadd.f32 %v258, %v337
        %v339 = vpop.f32.mrf.mxu0
        %v340 = vadd.f32 %v258, %v339
        %341 = vdwg.mxu0
        %v342 = vld [vmem:[%s215] sm:$0xff]
        %v343 = vld [vmem:[%s215 + $0x8] sm:$0xff]
        %v344 = vld [vmem:[%s215 + $0x10] sm:$0xff]
        %v345 = vld [vmem:[%s215 + $0x18] sm:$0xff]
        %v346 = vld [vmem:[%s215 + $0x20] sm:$0xff]
        %v347 = vld [vmem:[%s215 + $0x28] sm:$0xff]
        %v348 = vld [vmem:[%s215 + $0x30] sm:$0xff]
        %v349 = vld [vmem:[%s215 + $0x38] sm:$0xff]
        %v350 = vld [vmem:[%s215 + $0x40] sm:$0xff]
        %v351 = vld [vmem:[%s215 + $0x48] sm:$0xff]
        %v352 = vld [vmem:[%s215 + $0x50] sm:$0xff]
        %v353 = vld [vmem:[%s215 + $0x58] sm:$0xff]
        %v354 = vld [vmem:[%s215 + $0x60] sm:$0xff]
        %v355 = vld [vmem:[%s215 + $0x68] sm:$0xff]
        %v356 = vld [vmem:[%s215 + $0x70] sm:$0xff]
        %v357 = vld [vmem:[%s215 + $0x78] sm:$0xff]
        %v358 = vld [vmem:[%s215 + $0x80] sm:$0xff]
        %v359 = vld [vmem:[%s215 + $0x88] sm:$0xff]
        %v360 = vld [vmem:[%s215 + $0x90] sm:$0xff]
        %v361 = vld [vmem:[%s215 + $0x98] sm:$0xff]
        %v362 = vld [vmem:[%s215 + $0xa0] sm:$0xff]
        %v363 = vld [vmem:[%s215 + $0xa8] sm:$0xff]
        %v364 = vld [vmem:[%s215 + $0xb0] sm:$0xff]
        %v365 = vld [vmem:[%s215 + $0xb8] sm:$0xff]
        %v366 = vld [vmem:[%s215 + $0xc0] sm:$0xff]
        %v367 = vld [vmem:[%s215 + $0xc8] sm:$0xff]
        %v368 = vld [vmem:[%s215 + $0xd0] sm:$0xff]
        %v369 = vld [vmem:[%s215 + $0xd8] sm:$0xff]
        %v370 = vld [vmem:[%s215 + $0xe0] sm:$0xff]
        %v371 = vld [vmem:[%s215 + $0xe8] sm:$0xff]
        %v372 = vld [vmem:[%s215 + $0xf0] sm:$0xff]
        %v373 = vld [vmem:[%s215 + $0xf8] sm:$0xff]
        %v374 = vld [vmem:[%s215 + $0x100] sm:$0xff]
        %v375 = vld [vmem:[%s215 + $0x108] sm:$0xff]
        %v376 = vld [vmem:[%s215 + $0x110] sm:$0xff]
        %v377 = vld [vmem:[%s215 + $0x118] sm:$0xff]
        %v378 = vld [vmem:[%s215 + $0x120] sm:$0xff]
        %v379 = vld [vmem:[%s215 + $0x128] sm:$0xff]
        %v380 = vld [vmem:[%s215 + $0x130] sm:$0xff]
        %v381 = vld [vmem:[%s215 + $0x138] sm:$0xff]
        %v382 = vld [vmem:[%s215 + $0x140] sm:$0xff]
        %v383 = vld [vmem:[%s215 + $0x148] sm:$0xff]
        %v384 = vld [vmem:[%s215 + $0x150] sm:$0xff]
        %v385 = vld [vmem:[%s215 + $0x158] sm:$0xff]
        %v386 = vld [vmem:[%s215 + $0x160] sm:$0xff]
        %v387 = vld [vmem:[%s215 + $0x168] sm:$0xff]
        %v388 = vld [vmem:[%s215 + $0x170] sm:$0xff]
        %v389 = vld [vmem:[%s215 + $0x178] sm:$0xff]
        %v390 = vld [vmem:[%s215 + $0x180] sm:$0xff]
        %v391 = vld [vmem:[%s215 + $0x188] sm:$0xff]
        %v392 = vld [vmem:[%s215 + $0x190] sm:$0xff]
        %v393 = vld [vmem:[%s215 + $0x198] sm:$0xff]
        %v394 = vld [vmem:[%s215 + $0x1a0] sm:$0xff]
        %v395 = vld [vmem:[%s215 + $0x1a8] sm:$0xff]
        %v396 = vld [vmem:[%s215 + $0x1b0] sm:$0xff]
        %v397 = vld [vmem:[%s215 + $0x1b8] sm:$0xff]
        %v398 = vld [vmem:[%s215 + $0x1c0] sm:$0xff]
        %v399 = vld [vmem:[%s215 + $0x1c8] sm:$0xff]
        %v400 = vld [vmem:[%s215 + $0x1d0] sm:$0xff]
        %v401 = vld [vmem:[%s215 + $0x1d8] sm:$0xff]
        %v402 = vld [vmem:[%s215 + $0x1e0] sm:$0xff]
        %v403 = vld [vmem:[%s215 + $0x1e8] sm:$0xff]
        %v404 = vld [vmem:[%s215 + $0x1f0] sm:$0xff]
        %v405 = vld [vmem:[%s215 + $0x1f8] sm:$0xff]
        %v406 = vld [vmem:[%s215 + $0x200] sm:$0xff]
        %v407 = vld [vmem:[%s215 + $0x208] sm:$0xff]
        %v408 = vld [vmem:[%s215 + $0x210] sm:$0xff]
        %v409 = vld [vmem:[%s215 + $0x218] sm:$0xff]
        %v410 = vld [vmem:[%s215 + $0x220] sm:$0xff]
        %v411 = vld [vmem:[%s215 + $0x228] sm:$0xff]
        %v412 = vld [vmem:[%s215 + $0x230] sm:$0xff]
        %v413 = vld [vmem:[%s215 + $0x238] sm:$0xff]
        %v414 = vld [vmem:[%s215 + $0x240] sm:$0xff]
        %v415 = vld [vmem:[%s215 + $0x248] sm:$0xff]
        %v416 = vld [vmem:[%s215 + $0x250] sm:$0xff]
        %v417 = vld [vmem:[%s215 + $0x258] sm:$0xff]
        %v418 = vld [vmem:[%s215 + $0x260] sm:$0xff]
        %v419 = vld [vmem:[%s215 + $0x268] sm:$0xff]
        %v420 = vld [vmem:[%s215 + $0x270] sm:$0xff]
        %v421 = vld [vmem:[%s215 + $0x278] sm:$0xff]
        %v422 = vld [vmem:[%s215 + $0x280] sm:$0xff]
        %v423 = vld [vmem:[%s215 + $0x288] sm:$0xff]
        %v424 = vld [vmem:[%s215 + $0x290] sm:$0xff]
        %v425 = vld [vmem:[%s215 + $0x298] sm:$0xff]
        %v426 = vld [vmem:[%s215 + $0x2a0] sm:$0xff]
        %v427 = vld [vmem:[%s215 + $0x2a8] sm:$0xff]
        %v428 = vld [vmem:[%s215 + $0x2b0] sm:$0xff]
        %v429 = vld [vmem:[%s215 + $0x2b8] sm:$0xff]
        %v430 = vld [vmem:[%s215 + $0x2c0] sm:$0xff]
        %v431 = vld [vmem:[%s215 + $0x2c8] sm:$0xff]
        %v432 = vld [vmem:[%s215 + $0x2d0] sm:$0xff]
        %v433 = vld [vmem:[%s215 + $0x2d8] sm:$0xff]
        %v434 = vld [vmem:[%s215 + $0x2e0] sm:$0xff]
        %v435 = vld [vmem:[%s215 + $0x2e8] sm:$0xff]
        %v436 = vld [vmem:[%s215 + $0x2f0] sm:$0xff]
        %v437 = vld [vmem:[%s215 + $0x2f8] sm:$0xff]
        %v438 = vld [vmem:[%s215 + $0x300] sm:$0xff]
        %v439 = vld [vmem:[%s215 + $0x308] sm:$0xff]
        %v440 = vld [vmem:[%s215 + $0x310] sm:$0xff]
        %v441 = vld [vmem:[%s215 + $0x318] sm:$0xff]
        %v442 = vld [vmem:[%s215 + $0x320] sm:$0xff]
        %v443 = vld [vmem:[%s215 + $0x328] sm:$0xff]
        %v444 = vld [vmem:[%s215 + $0x330] sm:$0xff]
        %v445 = vld [vmem:[%s215 + $0x338] sm:$0xff]
        %v446 = vld [vmem:[%s215 + $0x340] sm:$0xff]
        %v447 = vld [vmem:[%s215 + $0x348] sm:$0xff]
        %v448 = vld [vmem:[%s215 + $0x350] sm:$0xff]
        %v449 = vld [vmem:[%s215 + $0x358] sm:$0xff]
        %v450 = vld [vmem:[%s215 + $0x360] sm:$0xff]
        %v451 = vld [vmem:[%s215 + $0x368] sm:$0xff]
        %v452 = vld [vmem:[%s215 + $0x370] sm:$0xff]
        %v453 = vld [vmem:[%s215 + $0x378] sm:$0xff]
        %v454 = vld [vmem:[%s215 + $0x380] sm:$0xff]
        %v455 = vld [vmem:[%s215 + $0x388] sm:$0xff]
        %v456 = vld [vmem:[%s215 + $0x390] sm:$0xff]
        %v457 = vld [vmem:[%s215 + $0x398] sm:$0xff]
        %v458 = vld [vmem:[%s215 + $0x3a0] sm:$0xff]
        %v459 = vld [vmem:[%s215 + $0x3a8] sm:$0xff]
        %v460 = vld [vmem:[%s215 + $0x3b0] sm:$0xff]
        %v461 = vld [vmem:[%s215 + $0x3b8] sm:$0xff]
        %v462 = vld [vmem:[%s215 + $0x3c0] sm:$0xff]
        %v463 = vld [vmem:[%s215 + $0x3c8] sm:$0xff]
        %v464 = vld [vmem:[%s215 + $0x3d0] sm:$0xff]
        %v465 = vld [vmem:[%s215 + $0x3d8] sm:$0xff]
        %v466 = vld [vmem:[%s215 + $0x3e0] sm:$0xff]
        %v467 = vld [vmem:[%s215 + $0x3e8] sm:$0xff]
        %v468 = vld [vmem:[%s215 + $0x3f0] sm:$0xff]
        %v469 = vld [vmem:[%s215 + $0x3f8] sm:$0xff]
        %470 = vmatprep.subr.mxu0 %v403
        %471 = vmatpush1.msra.mxu0 %v402
        %472 = vmatprep.subr.mxu0 %v399
        %473 = vmatpush1.msra.mxu0 %v398
        %474 = vmatprep.subr.mxu0 %v395
        %475 = vmatpush1.msra.mxu0 %v394
        %476 = vmatprep.subr.mxu0 %v391
        %477 = vmatpush1.msra.mxu0 %v390
        %478 = vmatprep.subr.mxu0 %v387
        %479 = vmatpush1.msra.mxu0 %v386
        %480 = vmatprep.subr.mxu0 %v383
        %481 = vmatpush1.msra.mxu0 %v382
        %482 = vmatprep.subr.mxu0 %v379
        %483 = vmatpush1.msra.mxu0 %v378
        %484 = vmatprep.subr.mxu0 %v375
        %485 = vmatpush1.msra.mxu0 %v374
        %486 = vmatprep.subr.mxu0 %v371
        %487 = vmatpush1.msra.mxu0 %v370
        %488 = vmatprep.subr.mxu0 %v367
        %489 = vmatpush1.msra.mxu0 %v366
        %490 = vmatprep.subr.mxu0 %v363
        %491 = vmatpush1.msra.mxu0 %v362
        %492 = vmatprep.subr.mxu0 %v359
        %493 = vmatpush1.msra.mxu0 %v358
        %494 = vmatprep.subr.mxu0 %v355
        %495 = vmatpush1.msra.mxu0 %v354
        %496 = vmatprep.subr.mxu0 %v351
        %497 = vmatpush1.msra.mxu0 %v350
        %498 = vmatprep.subr.mxu0 %v347
        %499 = vmatpush1.msra.mxu0 %v346
        %500 = vmatprep.subr.mxu0 %v343
        %501 = vmatpush1.msra.mxu0 %v342
        %502 = vmatprep.subr.mxu0 %v467
        %503 = vmatpush2.msra.mxu0 %v466
        %504 = vmatprep.subr.mxu0 %v463
        %505 = vmatpush2.msra.mxu0 %v462
        %506 = vmatprep.subr.mxu0 %v459
        %507 = vmatpush2.msra.mxu0 %v458
        %508 = vmatprep.subr.mxu0 %v455
        %509 = vmatpush2.msra.mxu0 %v454
        %510 = vmatprep.subr.mxu0 %v451
        %511 = vmatpush2.msra.mxu0 %v450
        %512 = vmatprep.subr.mxu0 %v447
        %513 = vmatpush2.msra.mxu0 %v446
        %514 = vmatprep.subr.mxu0 %v443
        %515 = vmatpush2.msra.mxu0 %v442
        %516 = vmatprep.subr.mxu0 %v439
        %517 = vmatpush2.msra.mxu0 %v438
        %518 = vmatprep.subr.mxu0 %v435
        %519 = vmatpush2.msra.mxu0 %v434
        %520 = vmatprep.subr.mxu0 %v431
        %521 = vmatpush2.msra.mxu0 %v430
        %522 = vmatprep.subr.mxu0 %v427
        %523 = vmatpush2.msra.mxu0 %v426
        %524 = vmatprep.subr.mxu0 %v423
        %525 = vmatpush2.msra.mxu0 %v422
        %526 = vmatprep.subr.mxu0 %v419
        %527 = vmatpush2.msra.mxu0 %v418
        %528 = vmatprep.subr.mxu0 %v415
        %529 = vmatpush2.msra.mxu0 %v414
        %530 = vmatprep.subr.mxu0 %v411
        %531 = vmatpush2.msra.mxu0 %v410
        %532 = vmatprep.subr.mxu0 %v407
        %533 = vmatpush2.msra.mxu0 %v406
        %534 = vmatprep.mubr.f32.mxu0 %v340
        %535 = vmatmul.mubr.f32.gmra.mxu0 %v338
        %v536 = vpop.f32.mrf.mxu0
        %v537 = vadd.f32 0.0, %v536
        %v538 = vpop.f32.mrf.mxu0
        %v539 = vadd.f32 0.0, %v538
        %540 = vdwg.mxu0
        %541 = vmatprep.subr.mxu0 %v405
        %542 = vmatpush1.msra.mxu0 %v404
        %543 = vmatprep.subr.mxu0 %v401
        %544 = vmatpush1.msra.mxu0 %v400
        %545 = vmatprep.subr.mxu0 %v397
        %546 = vmatpush1.msra.mxu0 %v396
        %547 = vmatprep.subr.mxu0 %v393
        %548 = vmatpush1.msra.mxu0 %v392
        %549 = vmatprep.subr.mxu0 %v389
        %550 = vmatpush1.msra.mxu0 %v388
        %551 = vmatprep.subr.mxu0 %v385
        %552 = vmatpush1.msra.mxu0 %v384
        %553 = vmatprep.subr.mxu0 %v381
        %554 = vmatpush1.msra.mxu0 %v380
        %555 = vmatprep.subr.mxu0 %v377
        %556 = vmatpush1.msra.mxu0 %v376
        %557 = vmatprep.subr.mxu0 %v373
        %558 = vmatpush1.msra.mxu0 %v372
        %559 = vmatprep.subr.mxu0 %v369
        %560 = vmatpush1.msra.mxu0 %v368
        %561 = vmatprep.subr.mxu0 %v365
        %562 = vmatpush1.msra.mxu0 %v364
        %563 = vmatprep.subr.mxu0 %v361
        %564 = vmatpush1.msra.mxu0 %v360
        %565 = vmatprep.subr.mxu0 %v357
        %566 = vmatpush1.msra.mxu0 %v356
        %567 = vmatprep.subr.mxu0 %v353
        %568 = vmatpush1.msra.mxu0 %v352
        %569 = vmatprep.subr.mxu0 %v349
        %570 = vmatpush1.msra.mxu0 %v348
        %571 = vmatprep.subr.mxu0 %v345
        %572 = vmatpush1.msra.mxu0 %v344
        %573 = vmatprep.subr.mxu0 %v469
        %574 = vmatpush2.msra.mxu0 %v468
        %575 = vmatprep.subr.mxu0 %v465
        %576 = vmatpush2.msra.mxu0 %v464
        %577 = vmatprep.subr.mxu0 %v461
        %578 = vmatpush2.msra.mxu0 %v460
        %579 = vmatprep.subr.mxu0 %v457
        %580 = vmatpush2.msra.mxu0 %v456
        %581 = vmatprep.subr.mxu0 %v453
        %582 = vmatpush2.msra.mxu0 %v452
        %583 = vmatprep.subr.mxu0 %v449
        %584 = vmatpush2.msra.mxu0 %v448
        %585 = vmatprep.subr.mxu0 %v445
        %586 = vmatpush2.msra.mxu0 %v444
        %587 = vmatprep.subr.mxu0 %v441
        %588 = vmatpush2.msra.mxu0 %v440
        %589 = vmatprep.subr.mxu0 %v437
        %590 = vmatpush2.msra.mxu0 %v436
        %591 = vmatprep.subr.mxu0 %v433
        %592 = vmatpush2.msra.mxu0 %v432
        %593 = vmatprep.subr.mxu0 %v429
        %594 = vmatpush2.msra.mxu0 %v428
        %595 = vmatprep.subr.mxu0 %v425
        %596 = vmatpush2.msra.mxu0 %v424
        %597 = vmatprep.subr.mxu0 %v421
        %598 = vmatpush2.msra.mxu0 %v420
        %599 = vmatprep.subr.mxu0 %v417
        %600 = vmatpush2.msra.mxu0 %v416
        %601 = vmatprep.subr.mxu0 %v413
        %602 = vmatpush2.msra.mxu0 %v412
        %603 = vmatprep.subr.mxu0 %v409
        %604 = vmatpush2.msra.mxu0 %v408
        %605 = vmatprep.mubr.f32.mxu0 %v340
        %606 = vmatmul.mubr.f32.gmra.mxu0 %v338
        %v607 = vpop.f32.mrf.mxu0
        %v608 = vadd.f32 0.0, %v607
        %v609 = vpop.f32.mrf.mxu0
        %v610 = vadd.f32 0.0, %v609
        %611 = vdwg.mxu0
        %v612 = vmul.f32 %v537, 0.5
        %v613 = vmul.f32 %v539, 0.5
        %v614 = vmul.f32 %v608, 0.5
        %v615 = vmul.f32 %v610, 0.5
        %v616 = vtanh.pop %v612
        %v617 = vtanh.pop %v613
        %v618 = vtanh.pop %v614
        %v619 = vtanh.pop %v615
        %v620 = vmul.f32 %v616, 0.5
        %v621 = vmul.f32 %v617, 0.5
        %v622 = vmul.f32 %v618, 0.5
        %v623 = vmul.f32 %v619, 0.5
        %v624 = vadd.f32 %v620, 0.5
        %v625 = vadd.f32 %v621, 0.5
        %v626 = vadd.f32 %v622, 0.5
        %v627 = vadd.f32 %v623, 0.5
        %628 = vst [vmem:[%s244] sm:$0xff] %v624
        %629 = vst [vmem:[%s244 + $0x8] sm:$0xff] %v625
        %630 = vst [vmem:[%s244 + $0x10] sm:$0xff] %v626
        %631 = vst [vmem:[%s244 + $0x18] sm:$0xff] %v627
        %s632 = sand.u32 %s137, 1
        %s633 = scalar_lea.sflag [#allocation4], %s632
        %s634 = sand.u32 %s137, 1
        %s635 = smul.addr %s634, 32
        %s636 = scalar_lea.vmem [#allocation5], %s635
        // Predicated region
        $region41: #{tpu_custom_call.1} parent=35 // pred_check
          %p637 = pneg %p147
        $region42: #{tpu_custom_call.1} parent=35 // pred_check_branch
          %639 = sbr.rel (%p637) target = $region44
        $region43: #{tpu_custom_call.1} parent=35 // pred_region
          %s640 = smul.u32 4, %s26
          %s642 = ssub.s32 512, 512
          %643 = vsyncadd %s633, %s642
          %s644 = smul.addr %s25, 8
          %s645 = sadd.s32 %s640, %s644
          %s646 = smul.addr %s645, 128
          %s647 = scalar_lea.hbm %s4, %s646
          %s649 = sshll.u32 %s636, 4
          %s650 = int_to_ptr.vmem [resolvable:$true] %s649
          %652 = dma.vmem_to_hbm [thread:$0]  %s650, 512, %s647, %s633
        $region44: #{tpu_custom_call.1} parent=35 // pred_fallthru
          _
      $region36: #{tpu_custom_call.1} parent=5 // pred_fallthru
        _
      %p653 = scmp.le.s32.totalorder 2, %s16
      // Predicated region
      $region45: #{tpu_custom_call.1} parent=5 // pred_check
        %p654 = pneg %p653
      $region46: #{tpu_custom_call.1} parent=5 // pred_check_branch
        %656 = sbr.rel (%p654) target = $region48
      $region47: #{tpu_custom_call.1} parent=5 // pred_region
        %s657 = ssub.s32 %s16, 2
        // Predicated region
        $region49: #{tpu_custom_call.1} parent=47 // pred_check
          %p658 = pneg %p153
        $region50: #{tpu_custom_call.1} parent=47 // pred_check_branch
          %660 = sbr.rel (%p658) target = $region52
        $region51: #{tpu_custom_call.1} parent=47 // pred_region
          %s661 = sand.u32 %s138, 1
          %s662 = scalar_lea.sflag [#allocation4], %s661
          %s663 = sand.u32 %s138, 1
          %s664 = smul.addr %s663, 32
          %s665 = scalar_lea.vmem [#allocation5], %s664
          %666 = dma.done %s662, 512
        $region52: #{tpu_custom_call.1} parent=47 // pred_fallthru
          _
      $region48: #{tpu_custom_call.1} parent=5 // pred_fallthru
        _
    $region6: #{tpu_custom_call.1} parent=1 // loop_footer
      %s20 = sadd.s32 1, %s16
    $region7: #{tpu_custom_call.1} parent=1 // loop_footer_branch
      %15 = sbr.rel target = $region3
    $region8: #{tpu_custom_call.1} parent=1 // loop_exit
      _
    %667 = vsyncpa [#allocation3], 1
    %s668 = scalar_lea.sflag [#allocation3], 1
    %669 = vsyncpa %s668, 1
    %670 = vsyncpa [#allocation4], 1
    %s671 = scalar_lea.sflag [#allocation4], 1
    %672 = vsyncpa %s671, 1

</llo_original>
